<compile_context>
chip_gen: v6e
topology: v6e:2x2x1
jax: 0.10.0
libtpu: 0.0.40
codegen_flags: <defaults>
</compile_context>

<pallas_src>
import functools

import jax
import jax.numpy as jnp
from jax.experimental import pallas as pl
from jax.experimental.pallas import tpu as pltpu


def _round_up(x, m):
    return ((x + m - 1) // m) * m


def _linear_kernel(x_ref, wt_ref, b_ref, o_ref, acc_ref, *, nk):
    # x_ref:  (tm, tk)  operand dtype      wt_ref: (tk, tn) operand dtype
    # b_ref:  (1, tn)   float32            o_ref:  (tm, tn) output dtype
    # acc_ref:(tm, tn)  float32 scratch (resident across the K grid axis)
    part = jnp.dot(x_ref[...], wt_ref[...], preferred_element_type=jnp.float32)

    if nk == 1:
        # Single K step: write dot + bias straight to the output, no
        # accumulator store/reload at all.
        o_ref[...] = (part + b_ref[...]).astype(o_ref.dtype)
    else:
        k = pl.program_id(2)

        @pl.when(k == 0)
        def _():
            acc_ref[...] = part

        @pl.when(jnp.logical_and(k > 0, k < nk - 1))
        def _():
            acc_ref[...] += part

        @pl.when(k == nk - 1)
        def _():
            # Fused epilogue: last partial + accumulator + bias, single store.
            o_ref[...] = (acc_ref[...] + part + b_ref[...]).astype(o_ref.dtype)


def prepare_linear_params(weight, bias, *, tn=512, tk=1024,
                          operand_dtype=jnp.bfloat16):
    """One-time weight preparation (hoisted out of the per-call path).

    weight: [Dout, Din] (PyTorch convention), bias: [Dout].
    Returns (wt_p, bias_p, tn_eff, tk_eff) where
      wt_p  : [Kp, Np] = padded W^T in `operand_dtype` (K-major RHS)
      bias_p: [1, Np]  float32
    """
    assert tn % 128 == 0 and tk % 128 == 0, (tn, tk)
    Dout, Din = weight.shape

    tn_eff = min(tn, _round_up(Dout, 128))
    tk_eff = min(tk, _round_up(Din, 128))

    # v7x has 2 TensorCores sharded over "parallel" grid axes: make sure the
    # N axis has >= 2 blocks whenever possible, so small-batch calls (single
    # M block) still keep both cores busy.
    n128 = _round_up(Dout, 128)
    if n128 // tn_eff <= 1 and n128 >= 256:
        tn_eff = _round_up(n128 // 2, 128)

    Np = _round_up(Dout, tn_eff)
    Kp = _round_up(Din, tk_eff)

    wt = weight.T.astype(operand_dtype)  # [Din, Dout]
    if Kp != Din or Np != Dout:
        wt = jnp.pad(wt, ((0, Kp - Din), (0, Np - Dout)))

    bias2d = bias.astype(jnp.float32).reshape(1, Dout)
    if Np != Dout:
        bias2d = jnp.pad(bias2d, ((0, 0), (0, Np - Dout)))

    return wt, bias2d, tn_eff, tk_eff


@functools.partial(jax.jit, static_argnames=("out_dim", "tn", "tk", "tm"))
def linear_forward(x, wt_p, bias_p, *, out_dim, tn, tk, tm=512):
    """y = x @ W^T + b using the prepared (transposed/padded/cast) weight.

    x:      [..., Din]
    wt_p:   [Kp, Np]  (from prepare_linear_params)
    bias_p: [1, Np]   float32
    """
    assert tm % 8 == 0, tm
    orig_shape = x.shape
    Din = orig_shape[-1]
    x2 = x.reshape(-1, Din)
    B = x2.shape[0]

    Kp, Np = wt_p.shape
    assert Np % tn == 0 and Kp % tk == 0, (Np, tn, Kp, tk)
    assert Din <= Kp, (Din, Kp)

    operand_dtype = wt_p.dtype
    in_bytes = jnp.dtype(operand_dtype).itemsize
    out_dtype = x.dtype
    out_bytes = jnp.dtype(out_dtype).itemsize

    # dtype-aware sublane granule: 8 rows for f32, 16 for bf16, 32 for 1-byte.
    granule = 32 // in_bytes
    tm_eff = min(tm, _round_up(B, granule))
    Bp = _round_up(B, tm_eff)

    x_p = x2.astype(operand_dtype)
    if Bp != B or Kp != Din:
        # Zero padding on K contributes 0 to the dot; padded rows are sliced off.
        x_p = jnp.pad(x_p, ((0, Bp - B), (0, Kp - Din)))

    grid = (Bp // tm_eff, Np // tn, Kp // tk)
    nk = grid[2]

    # Double-buffered VMEM footprint (inputs, output) + f32 accumulator.
    vmem_bytes = (2 * tm_eff * tk * in_bytes
                  + 2 * tk * tn * in_bytes
                  + 2 * tm_eff * tn * out_bytes
                  + tm_eff * tn * 4
                  + 2 * tn * 4)
    vmem_limit = int(min(64 * 2**20, max(32 * 2**20, 2 * vmem_bytes)))

    cost = pl.CostEstimate(
        flops=2 * Bp * Np * Kp,
        transcendentals=0,
        bytes_accessed=in_bytes * (Bp * Kp + Kp * Np) + out_bytes * Bp * Np + 4 * Np,
    )

    out_p = pl.pallas_call(
        functools.partial(_linear_kernel, nk=nk),
        out_shape=jax.ShapeDtypeStruct((Bp, Np), out_dtype),
        grid_spec=pltpu.PrefetchScalarGridSpec(
            num_scalar_prefetch=0,
            grid=grid,
            in_specs=[
                pl.BlockSpec((tm_eff, tk), lambda i, j, k: (i, k)),  # x tile
                pl.BlockSpec((tk, tn), lambda i, j, k: (k, j)),      # W^T tile
                pl.BlockSpec((1, tn), lambda i, j, k: (0, j)),       # bias tile
            ],
            out_specs=pl.BlockSpec((tm_eff, tn), lambda i, j, k: (i, j)),
            scratch_shapes=[pltpu.VMEM((tm_eff, tn), jnp.float32)],
        ),
        compiler_params=pltpu.CompilerParams(
            dimension_semantics=("parallel", "parallel", "arbitrary"),
            vmem_limit_bytes=vmem_limit,
        ),
        cost_estimate=cost,
    )(x_p, wt_p, bias_p)

    y = out_p[:B, :out_dim]
    return y.reshape(orig_shape[:-1] + (out_dim,))


def init_linear_params(key, input_dim, out_dim, init_std=0.01, dtype=jnp.float32):
    """Mimics the PyTorch module's init:
       - weight ~ Normal(0, init_std)             (from init_weights)
       - bias   ~ Uniform(-1/sqrt(fan_in), +)     (nn.Linear default, untouched)
    """
    kw, kb = jax.random.split(key)
    weight = init_std * jax.random.normal(kw, (out_dim, input_dim), dtype=dtype)
    bound = 1.0 / jnp.sqrt(jnp.asarray(input_dim, dtype=dtype))
    bias = jax.random.uniform(kb, (out_dim,), dtype=dtype, minval=-bound, maxval=bound)
    return weight, bias


if __name__ == "__main__":
    key = jax.random.PRNGKey(0)
    k_x, k_p = jax.random.split(key)

    # Small demo shapes consistent with the module (Linear over the last dim).
    batch, input_dim, out_dim = 8, 32, 16
    x = jax.random.normal(k_x, (batch, input_dim), dtype=jnp.float32)
    weight, bias = init_linear_params(k_p, input_dim, out_dim, init_std=0.01)

    # One-time weight prep (transpose + pad + bf16 cast), then the kernel call.
    wt_p, bias_p, tn_eff, tk_eff = prepare_linear_params(weight, bias)
    y = linear_forward(x, wt_p, bias_p, out_dim=out_dim, tn=tn_eff, tk=tk_eff)
    y = jax.block_until_ready(y)

    # Reference with bf16-rounded operands (kernel feeds the MXU bf16 and
    # accumulates in f32) — precision tradeoff flagged per the review.
    xb = x.astype(jnp.bfloat16).astype(jnp.float32)
    wb = weight.astype(jnp.bfloat16).astype(jnp.float32)
    y_ref = xb @ wb.T + bias
    assert y.shape == (batch, out_dim)
    assert jnp.allclose(y, y_ref, atol=2e-3, rtol=2e-3), float(
        jnp.max(jnp.abs(y - y_ref)))

    # Exercise the multi-tile path (M, N and K grids all > 1) once:
    # accumulator, fused epilogue, and the >=2-N-block split.
    B2, D2in, D2out = 640, 1536, 768
    kx2, kp2 = jax.random.split(jax.random.PRNGKey(1))
    x2 = jax.random.normal(kx2, (B2, D2in), dtype=jnp.float32)
    w2, b2 = init_linear_params(kp2, D2in, D2out, init_std=0.01)
    wt2_p, b2_p, tn2, tk2 = prepare_linear_params(w2, b2)
    y2 = jax.block_until_ready(
        linear_forward(x2, wt2_p, b2_p, out_dim=D2out, tn=tn2, tk=tk2))
    x2b = x2.astype(jnp.bfloat16).astype(jnp.float32)
    w2b = w2.astype(jnp.bfloat16).astype(jnp.float32)
    y2_ref = x2b @ w2b.T + b2
    assert y2.shape == (B2, D2out)
    assert jnp.allclose(y2, y2_ref, atol=5e-2, rtol=5e-2), float(
        jnp.max(jnp.abs(y2 - y2_ref)))

    print("KERNEL_OK")
</pallas_src>

<mosaic_0001>
module attributes {stable_mosaic.version = 11 : i64} {
  func.func @_linear_kernel(%arg0: i32, %arg1: i32, %arg2: i32, %arg3: memref<16x128xbf16, #tpu.memory_space<vmem>>, %arg4: memref<128x128xbf16, #tpu.memory_space<vmem>>, %arg5: memref<1x128xf32, #tpu.memory_space<vmem>>, %arg6: memref<16x128xf32, #tpu.memory_space<vmem>>, %arg7: memref<16x128xf32, #tpu.memory_space<vmem>>) attributes {dimension_semantics = [#tpu.dimension_semantics<parallel>, #tpu.dimension_semantics<parallel>, #tpu.dimension_semantics<arbitrary>], iteration_bounds = array<i64: 1, 1, 1>, scalar_prefetch = 0 : i64, scratch_operands = 1 : i64, tpu.core_type = #tpu.core_type<tc>, window_params = [{transform_indices = @transform_0, window_bounds = array<i64: 16, 128>}, {transform_indices = @transform_1, window_bounds = array<i64: 128, 128>}, {transform_indices = @transform_2, window_bounds = array<i64: 1, 128>}, {transform_indices = @transform_3, window_bounds = array<i64: 16, 128>}]} {
    %c0 = arith.constant 0 : index
    %c0_0 = arith.constant 0 : index
    %0 = vector.load %arg3[%c0, %c0_0] : memref<16x128xbf16, #tpu.memory_space<vmem>>, vector<16x128xbf16>
    %c0_1 = arith.constant 0 : index
    %c0_2 = arith.constant 0 : index
    %1 = vector.load %arg4[%c0_1, %c0_2] : memref<128x128xbf16, #tpu.memory_space<vmem>>, vector<128x128xbf16>
    %cst = arith.constant dense<0.000000e+00> : vector<16x128xf32>
    %2 = tpu.matmul %0, %1, %cst {dimension_numbers = #tpu.dot_dimension_numbers<[1], [0], [0], [1], [0, 0, 1, 1], [], []>} : vector<16x128xbf16>, vector<128x128xbf16>, vector<16x128xf32> -> vector<16x128xf32>
    %c0_3 = arith.constant 0 : index
    %c0_4 = arith.constant 0 : index
    %3 = vector.load %arg5[%c0_3, %c0_4] : memref<1x128xf32, #tpu.memory_space<vmem>>, vector<1x128xf32>
    %4 = vector.broadcast %3 : vector<1x128xf32> to vector<16x128xf32>
    %5 = arith.addf %2, %4 : vector<16x128xf32>
    %c0_5 = arith.constant 0 : index
    %c0_6 = arith.constant 0 : index
    %6 = vector.load %arg6[%c0_5, %c0_6] : memref<16x128xf32, #tpu.memory_space<vmem>>, vector<16x128xf32>
    tpu.vector_store %arg6[%c0_5, %c0_6], %5 {strides = array<i32>} : memref<16x128xf32, #tpu.memory_space<vmem>>, vector<16x128xf32>,
    return
  }
  func.func @transform_0(%arg0: i32, %arg1: i32, %arg2: i32) -> (i32, i32) {
    %c0_i32 = arith.constant 0 : i32
    return %arg0, %arg2 : i32, i32
  }
  func.func @transform_1(%arg0: i32, %arg1: i32, %arg2: i32) -> (i32, i32) {
    %c0_i32 = arith.constant 0 : i32
    return %arg2, %arg1 : i32, i32
  }
  func.func @transform_2(%arg0: i32, %arg1: i32, %arg2: i32) -> (i32, i32) {
    %c0_i32 = arith.constant 0 : i32
    %c0_i32_0 = arith.constant 0 : i32
    return %c0_i32, %arg1 : i32, i32
  }
  func.func @transform_3(%arg0: i32, %arg1: i32, %arg2: i32) -> (i32, i32) {
    %c0_i32 = arith.constant 0 : i32
    return %arg0, %arg1 : i32, i32
  }
}

</mosaic_0001>

<llo_original>
// kernel: linear_forward.1
$region0: #{linear_forward.1}
  #allocation0 [shape = 'u32[]', space=smem, size = 0x4, offset = 0x4, fixed_abs, tag = 'smem constant byte address 0x4 - core index']
  #allocation1 [shape = 'u32[144,128]{1,0:T(1,128)}', space=vmem, size = 0x12000, scoped, tag = 'internal scratch']
  #allocation2 [shape = 'f32[16,128]{1,0:T(8,128)}', space=vmem, size = 0x2000, scoped, tag = 'scratch operand']
  %s0 = inlined_call_operand.vmem [shape: bf16[16,128], index: 0, kind: input, shape index: {}]
  %s1 = inlined_call_operand.hbm [shape: bf16[128,128], index: 1, kind: input, shape index: {}]
  %s2 = inlined_call_operand.vmem [shape: f32[1,128], index: 2, kind: input, shape index: {}]
  %s3 = inlined_call_operand.vmem [shape: f32[16,128], index: 3, kind: output, shape index: {}]
  %s4 = sld [smem:[#allocation0]]
  $region26: #{linear_forward.1} parent=0
    _
  %s6 = ssub.s32 1, %s4
  %s7 = scalar_select 0, %s6, %s4
  $region1: #{linear_forward.1} parent=0
    #allocation3 [shape = 'u8[32768]{0}', space=vmem, size = 0x8000, scoped, tag = 'input window, operand 1, single buffered']
    #allocation4 [shape = 's32[1]{0}', space=sflag, size = 0x4, scoped, tag = 'scoped memory for linear_forward.1']
    %8 = vsyncpa [#allocation4], 0
    // Predicated region
    $region2: #{linear_forward.1} parent=1 // pred_check
      _
    $region3: #{linear_forward.1} parent=1 // pred_check_branch
      %10 = sbr.rel (0) target = $region5
    $region4: #{linear_forward.1} parent=1 // pred_region
      _
    $region5: #{linear_forward.1} parent=1 // pred_fallthru
      _
    // Predicated region
    $region6: #{linear_forward.1} parent=1 // pred_check
      _
    $region7: #{linear_forward.1} parent=1 // pred_check_branch
      %12 = sbr.rel (0) target = $region9
    $region8: #{linear_forward.1} parent=1 // pred_region
      %s14 = ssub.s32 1024, 1024
      %15 = vsyncadd [#allocation4], %s14
      %s16 = sshll.u32 [#allocation3], 4
      %s17 = int_to_ptr.vmem [resolvable:$true] %s16
      %22 = dma.hbm_to_vmem [thread:$0]  %s1, 1024, %s17, [#allocation4], 64, 64, 4
    $region9: #{linear_forward.1} parent=1 // pred_fallthru
      _
    // Predicated region
    $region10: #{linear_forward.1} parent=1 // pred_check
      _
    $region11: #{linear_forward.1} parent=1 // pred_check_branch
      %24 = sbr.rel (0) target = $region13
    $region12: #{linear_forward.1} parent=1 // pred_region
      _
    $region13: #{linear_forward.1} parent=1 // pred_fallthru
      _
    // Predicated region
    $region14: #{linear_forward.1} parent=1 // pred_check
      _
    $region15: #{linear_forward.1} parent=1 // pred_check_branch
      %26 = sbr.rel (0) target = $region17
    $region16: #{linear_forward.1} parent=1 // pred_region
      %27 = dma.done [#allocation4], 1024
    $region17: #{linear_forward.1} parent=1 // pred_fallthru
      _
    %v29 = vld [vmem:[%s0] sm:$0xf]
    %v30 = vld [vmem:[%s0 + $0x4] sm:$0xf]
    %v31 = vld [vmem:[#allocation3] sm:$0xf]
    %v32 = vld [vmem:[#allocation3 + $0x4] sm:$0xf]
    %v33 = vld [vmem:[#allocation3 + $0x8] sm:$0xf]
    %v34 = vld [vmem:[#allocation3 + $0xc] sm:$0xf]
    %v35 = vld [vmem:[#allocation3 + $0x10] sm:$0xf]
    %v36 = vld [vmem:[#allocation3 + $0x14] sm:$0xf]
    %v37 = vld [vmem:[#allocation3 + $0x18] sm:$0xf]
    %v38 = vld [vmem:[#allocation3 + $0x1c] sm:$0xf]
    %v39 = vld [vmem:[#allocation3 + $0x20] sm:$0xf]
    %v40 = vld [vmem:[#allocation3 + $0x24] sm:$0xf]
    %v41 = vld [vmem:[#allocation3 + $0x28] sm:$0xf]
    %v42 = vld [vmem:[#allocation3 + $0x2c] sm:$0xf]
    %v43 = vld [vmem:[#allocation3 + $0x30] sm:$0xf]
    %v44 = vld [vmem:[#allocation3 + $0x34] sm:$0xf]
    %v45 = vld [vmem:[#allocation3 + $0x38] sm:$0xf]
    %v46 = vld [vmem:[#allocation3 + $0x3c] sm:$0xf]
    %v47 = vld [vmem:[%s2] sm:$0x1]
    %v49 = vlaneseq
    %v50 = vshrl.u32 %v49, 7
    %v51 = vsub.s32 0, %v50
    %v52 = vrot.slane %v47, %v51
    %v56 = vunpack.c.l.b16 %v29
    %v57 = vunpack.c.l.b16 %v30
    %v58 = vpack.c.b16 %v57, %v56
    %v76 = vunpack.c.l.b16 %v31
    %v77 = vunpack.c.l.b16 %v32
    %v78 = vunpack.c.l.b16 %v33
    %v79 = vunpack.c.l.b16 %v34
    %v80 = vunpack.c.l.b16 %v35
    %v81 = vunpack.c.l.b16 %v36
    %v82 = vunpack.c.l.b16 %v37
    %v83 = vunpack.c.l.b16 %v38
    %v84 = vunpack.c.l.b16 %v39
    %v85 = vunpack.c.l.b16 %v40
    %v86 = vunpack.c.l.b16 %v41
    %v87 = vunpack.c.l.b16 %v42
    %v88 = vunpack.c.l.b16 %v43
    %v89 = vunpack.c.l.b16 %v44
    %v90 = vunpack.c.l.b16 %v45
    %v91 = vunpack.c.l.b16 %v46
    %v92 = vpack.c.b16 %v77, %v76
    %v93 = vpack.c.b16 %v79, %v78
    %v94 = vpack.c.b16 %v81, %v80
    %v95 = vpack.c.b16 %v83, %v82
    %v96 = vpack.c.b16 %v85, %v84
    %v97 = vpack.c.b16 %v87, %v86
    %v98 = vpack.c.b16 %v89, %v88
    %v99 = vpack.c.b16 %v91, %v90
    %108 = vmatprep.subr.bf16.mxu0 0
    %109 = vmatpush1.bf16.msra.mxu0 %v99
    %110 = vmatprep.subr.bf16.mxu0 0
    %111 = vmatpush1.bf16.msra.mxu0 %v98
    %112 = vmatprep.subr.bf16.mxu0 0
    %113 = vmatpush1.bf16.msra.mxu0 %v97
    %114 = vmatprep.subr.bf16.mxu0 0
    %115 = vmatpush1.bf16.msra.mxu0 %v96
    %116 = vmatprep.subr.bf16.mxu0 0
    %117 = vmatpush1.bf16.msra.mxu0 %v95
    %118 = vmatprep.subr.bf16.mxu0 0
    %119 = vmatpush1.bf16.msra.mxu0 %v94
    %120 = vmatprep.subr.bf16.mxu0 0
    %121 = vmatpush1.bf16.msra.mxu0 %v93
    %122 = vmatprep.subr.bf16.mxu0 0
    %123 = vmatpush1.bf16.msra.mxu0 %v92
    %124 = vmatprep.subr.bf16.mxu0 0
    %125 = vmatpush2.bf16.msra.mxu0 0
    %126 = vmatprep.subr.bf16.mxu0 0
    %127 = vmatpush2.bf16.msra.mxu0 0
    %128 = vmatprep.subr.bf16.mxu0 0
    %129 = vmatpush2.bf16.msra.mxu0 0
    %130 = vmatprep.subr.bf16.mxu0 0
    %131 = vmatpush2.bf16.msra.mxu0 0
    %132 = vmatprep.subr.bf16.mxu0 0
    %133 = vmatpush2.bf16.msra.mxu0 0
    %134 = vmatprep.subr.bf16.mxu0 0
    %135 = vmatpush2.bf16.msra.mxu0 0
    %136 = vmatprep.subr.bf16.mxu0 0
    %137 = vmatpush2.bf16.msra.mxu0 0
    %138 = vmatprep.subr.bf16.mxu0 0
    %139 = vmatpush2.bf16.msra.mxu0 0
    %140 = vmatprep.mubr.bf16.mxu0 0
    %141 = vmatmul.mubr.bf16.gmra.mxu0 %v58
    %v142 = vpop.f32.mrf.mxu0
    %v143 = vadd.f32 %v52, %v142
    %v144 = vpop.f32.mrf.mxu0
    %v145 = vpop.f32.mrf.mxu0
    %v146 = vadd.f32 %v52, %v145
    %v147 = vpop.f32.mrf.mxu0
    %148 = vdwg.mxu0
    %149 = vst [vmem:[%s3] sm:$0xff] %v143
    %150 = vst [vmem:[%s3 + $0x8] sm:$0xff] %v146
    // Predicated region
    $region18: #{linear_forward.1} parent=1 // pred_check
      _
    $region19: #{linear_forward.1} parent=1 // pred_check_branch
      %152 = sbr.rel (0) target = $region21
    $region20: #{linear_forward.1} parent=1 // pred_region
      _
    $region21: #{linear_forward.1} parent=1 // pred_fallthru
      _
    // Predicated region
    $region22: #{linear_forward.1} parent=1 // pred_check
      _
    $region23: #{linear_forward.1} parent=1 // pred_check_branch
      %154 = sbr.rel (0) target = $region25
    $region24: #{linear_forward.1} parent=1 // pred_region
      _
    $region25: #{linear_forward.1} parent=1 // pred_fallthru
      _
    %155 = vsyncpa [#allocation4], 1

</llo_original>
